<compile_context>
chip_gen: v6e
topology: v6e:2x2x1
jax: 0.10.0
libtpu: 0.0.40
codegen_flags: <defaults>
</compile_context>

<pallas_src>
import functools
import math

import jax
import jax.numpy as jnp
from jax.experimental import pallas as pl
from jax.experimental.pallas import tpu as pltpu


def self_attention_kernel(x_ref, mask_ref, wqkv_ref, o_ref, *, num_heads):
    tb, D, L = x_ref.shape
    d = D // num_heads

    # In-VMEM relayout to channel-last; HBM keeps the module's (B, D, L) layout so
    # the wrapper never does an extra HBM read+write transpose pass.
    x = jnp.transpose(x_ref[...], (0, 2, 1))              # (TB, L, D) f32
    xf = x.reshape(tb * L, D).astype(jnp.bfloat16)

    # Fused q|k|v projection: one wide bf16 MXU matmul, f32 accumulation.
    # The (D/H)^-0.5 query scale was folded into the weight on the host.
    qkv = jnp.dot(xf, wqkv_ref[...],
                  preferred_element_type=jnp.float32)      # (TB*L, 3D) f32
    qkv = qkv.reshape(tb, L, 3 * D).astype(jnp.bfloat16)   # MXU operand copy

    keep = mask_ref[...] > 0.0                             # (TB, 1, L) key mask
    neg = jnp.float32(-1e30)

    for h in range(num_heads):                             # small static H -> unrolled
        q_h = qkv[:, :, h * d:(h + 1) * d]                 # (TB, L, d) bf16
        k_h = qkv[:, :, D + h * d:D + (h + 1) * d]
        v_h = qkv[:, :, 2 * D + h * d:2 * D + (h + 1) * d]

        logits = jnp.einsum('bqd,bkd->bqk', q_h, k_h,
                            preferred_element_type=jnp.float32)   # (TB, L, L) f32
        # mask_logits: 0/1 mask -> single select is numerically identical.
        masked = jnp.where(keep, logits, neg)
        m = jnp.max(masked, axis=-1, keepdims=True)
        e = jnp.exp(masked - m)                            # f32 softmax numerator
        s = jnp.sum(e, axis=-1)                            # (TB, L) f32
        r = pl.reciprocal(s, approx=True)                  # EUP; deferred normalization

        # Unnormalized PV directly in channel-major layout; scale the small
        # (TB, d, L) result instead of the (TB, L, L) probabilities.
        out_h = jnp.einsum('bkd,bqk->bdq', v_h, e.astype(jnp.bfloat16),
                           preferred_element_type=jnp.float32)    # (TB, d, L)
        out_h = out_h * r[:, None, :]
        # Lane-dense (full-L) store of this head's channel slice of the output.
        o_ref[:, h * d:(h + 1) * d, :] = out_h.astype(o_ref.dtype)


def _pick_batch_tile(B, D, L, num_heads):
    """Generation-aware batch-tile choice from the real per-step footprint."""
    d = D // num_heads
    try:
        vmem_cap = int(getattr(pltpu.get_tpu_info(), "vmem_capacity_bytes",
                               64 * 1024 * 1024))
    except Exception:          # no hw info available -> conservative (v7x-sized)
        vmem_cap = 64 * 1024 * 1024
    # Headroom for Mosaic-internal scratch: 128 MiB chips -> 96 MiB, v7x 64 -> 48 MiB.
    vmem_limit = max(32 * 1024 * 1024, (vmem_cap * 3) // 4)
    budget = (vmem_limit * 4) // 5

    def footprint(tb):
        f32, bf16 = 4, 2
        io = 2 * 2 * tb * D * L * f32                 # x + out blocks, double-buffered
        w = 2 * D * 3 * D * bf16                      # fused weight, double-buffered
        proj = tb * L * D * (f32 + bf16)              # in-VMEM relayout + bf16 copy
        qkv = tb * L * 3 * D * (f32 + bf16)           # projection result + bf16 copy
        attn = 3 * tb * L * L * f32 + tb * d * L * f32  # logits/exp live + head out
        return io + w + proj + qkv + attn + (1 << 20)   # +1 MiB slack

    divisors = [t for t in range(1, B + 1) if B % t == 0]
    fitting = [t for t in divisors if footprint(t) <= budget]
    if not fitting:
        tb = 1
    else:
        # Keep >= 2 grid steps when possible so both v7x TensorCores get work.
        multi = [t for t in fitting if B // t >= 2]
        tb = max(multi) if multi else max(fitting)
    return tb, int(vmem_limit)


def self_attention_forward(x, mask, w_mem, w_query, num_heads):
    """x: (B, D, L) float32; mask: (B, L); w_mem: (2D, D); w_query: (D, D).

    Returns (B, D, L), matching the PyTorch module's output layout.
    """
    B, D, L = x.shape
    assert D % num_heads == 0
    d = D // num_heads
    scale = float(d) ** -0.5

    # Pre-transposed (D_in, D_out) weights, query scale folded in, fused q|k|v,
    # cast once to bf16 for the MXU (accumulation stays f32 in-kernel).
    wq = jnp.transpose(w_query).astype(jnp.float32) * jnp.float32(scale)
    wk = jnp.transpose(w_mem[:D]).astype(jnp.float32)
    wv = jnp.transpose(w_mem[D:]).astype(jnp.float32)
    wqkv = jnp.concatenate([wq, wk, wv], axis=1).astype(jnp.bfloat16)   # (D, 3D)

    mask3 = mask.astype(jnp.float32).reshape(B, 1, L)

    TB, vmem_limit = _pick_batch_tile(B, D, L, num_heads)
    grid = (B // TB,)

    grid_spec = pltpu.PrefetchScalarGridSpec(
        num_scalar_prefetch=0,
        grid=grid,
        in_specs=[
            pl.BlockSpec((TB, D, L), lambda b: (b, 0, 0)),   # x, module layout
            pl.BlockSpec((TB, 1, L), lambda b: (b, 0, 0)),   # key-position mask
            pl.BlockSpec((D, 3 * D), lambda b: (0, 0)),      # fused Wqkv^T (bf16)
        ],
        out_specs=pl.BlockSpec((TB, D, L), lambda b: (b, 0, 0)),
    )

    flops = 2 * B * L * D * (3 * D) + 4 * B * L * L * D
    cost = pl.CostEstimate(
        flops=flops,
        transcendentals=B * num_heads * L * L + B * num_heads * L,
        bytes_accessed=4 * (2 * B * D * L + B * L) + 2 * 3 * D * D,
    )

    return pl.pallas_call(
        functools.partial(self_attention_kernel, num_heads=num_heads),
        out_shape=jax.ShapeDtypeStruct((B, D, L), jnp.float32),
        grid_spec=grid_spec,
        compiler_params=pltpu.CompilerParams(
            dimension_semantics=("parallel",),
            vmem_limit_bytes=vmem_limit),
        cost_estimate=cost,
    )(x.astype(jnp.float32), mask3, wqkv)


def self_attention_reference(x, mask, w_mem, w_query, num_heads):
    """Plain-JAX f32 reference matching the PyTorch module (eval mode)."""
    B, D, L = x.shape
    d = D // num_heads
    memory = jnp.einsum('oi,bil->bol', w_mem, x)      # (B, 2D, L)
    query = jnp.einsum('oi,bil->bol', w_query, x)     # (B, D, L)
    memory = memory.transpose(0, 2, 1)                # (B, L, 2D)
    query = query.transpose(0, 2, 1)                  # (B, L, D)

    def split(t):
        return t.reshape(B, L, num_heads, d).transpose(0, 2, 1, 3)   # (B, H, L, d)

    Q = split(query) * (d ** -0.5)
    K = split(memory[:, :, :D])
    V = split(memory[:, :, D:])
    logits = jnp.einsum('bhqd,bhkd->bhqk', Q, K)
    m = mask.astype(jnp.float32).reshape(B, 1, 1, L)
    logits = m * logits + (-1e30) * (1 - m)
    w = jax.nn.softmax(logits, axis=-1)
    out = jnp.einsum('bhqk,bhkd->bhqd', w, V)
    out = out.transpose(0, 2, 1, 3).reshape(B, L, D)
    return out.transpose(0, 2, 1)                     # (B, D, L)


if __name__ == "__main__":
    # config: enc_filters -> D, attention_heads -> H; small demo shapes.
    B, D, L, H = 2, 32, 16, 4

    key = jax.random.PRNGKey(0)
    k1, k2, k3 = jax.random.split(key, 3)

    x = jax.random.normal(k1, (B, D, L), dtype=jnp.float32)

    # Padding-style 0/1 mask over key positions.
    lens = jnp.array([12, 9], dtype=jnp.int32)
    mask = (jnp.arange(L)[None, :] < lens[:, None]).astype(jnp.float32)

    # Xavier-uniform init for the 1x1 convs (kernel_size=1, bias=False).
    b_mem = math.sqrt(6.0 / (D + 2 * D))
    b_qry = math.sqrt(6.0 / (D + D))
    w_mem = jax.random.uniform(k2, (2 * D, D), jnp.float32, -b_mem, b_mem)
    w_query = jax.random.uniform(k3, (D, D), jnp.float32, -b_qry, b_qry)

    y = self_attention_forward(x, mask, w_mem, w_query, H)
    jax.block_until_ready(y)

    r = self_attention_reference(x, mask, w_mem, w_query, H)
    assert y.shape == (B, D, L)
    # bf16 MXU path + approx reciprocal -> loosened tolerance vs the f32 reference.
    assert jnp.allclose(y, r, rtol=5e-2, atol=5e-2), float(jnp.max(jnp.abs(y - r)))

    print("KERNEL_OK")
</pallas_src>

<mosaic_0001>
module attributes {stable_mosaic.version = 11 : i64} {
  func.func @self_attention_kernel(%arg0: i32, %arg1: memref<1x32x16xf32, #tpu.memory_space<vmem>>, %arg2: memref<1x1x16xf32, #tpu.memory_space<vmem>>, %arg3: memref<32x96xbf16, #tpu.memory_space<vmem>>, %arg4: memref<1x32x16xf32, #tpu.memory_space<vmem>>) attributes {dimension_semantics = [#tpu.dimension_semantics<parallel>], iteration_bounds = array<i64: 2>, scalar_prefetch = 0 : i64, scratch_operands = 0 : i64, tpu.core_type = #tpu.core_type<tc>, window_params = [{transform_indices = @transform_0, window_bounds = array<i64: 1, 32, 16>}, {transform_indices = @transform_1, window_bounds = array<i64: 1, 1, 16>}, {pipeline_mode = #tpu.pipeline_mode<synchronous>, transform_indices = @transform_2, window_bounds = array<i64: 32, 96>}, {transform_indices = @transform_3, window_bounds = array<i64: 1, 32, 16>}]} {
    %c0 = arith.constant 0 : index
    %c0_0 = arith.constant 0 : index
    %c0_1 = arith.constant 0 : index
    %0 = vector.load %arg1[%c0, %c0_0, %c0_1] : memref<1x32x16xf32, #tpu.memory_space<vmem>>, vector<1x32x16xf32>
    %1 = tpu.transpose %0, [0, 2, 1] : vector<1x32x16xf32> -> vector<1x16x32xf32>
    %2 = vector.shape_cast %1 : vector<1x16x32xf32> to vector<16x32xf32>
    %3 = arith.truncf %2 : vector<16x32xf32> to vector<16x32xbf16>
    %c0_2 = arith.constant 0 : index
    %c0_3 = arith.constant 0 : index
    %4 = vector.load %arg3[%c0_2, %c0_3] : memref<32x96xbf16, #tpu.memory_space<vmem>>, vector<32x96xbf16>
    %cst = arith.constant dense<0.000000e+00> : vector<16x96xf32>
    %5 = tpu.matmul %3, %4, %cst {dimension_numbers = #tpu.dot_dimension_numbers<[1], [0], [0], [1], [0, 0, 1, 1], [], []>} : vector<16x32xbf16>, vector<32x96xbf16>, vector<16x96xf32> -> vector<16x96xf32>
    %6 = vector.shape_cast %5 : vector<16x96xf32> to vector<1x16x96xf32>
    %7 = arith.truncf %6 : vector<1x16x96xf32> to vector<1x16x96xbf16>
    %c0_4 = arith.constant 0 : index
    %c0_5 = arith.constant 0 : index
    %c0_6 = arith.constant 0 : index
    %8 = vector.load %arg2[%c0_4, %c0_5, %c0_6] : memref<1x1x16xf32, #tpu.memory_space<vmem>>, vector<1x1x16xf32>
    %cst_7 = arith.constant 0.000000e+00 : f32
    %9 = vector.broadcast %cst_7 : f32 to vector<1x1x16xf32>
    %10 = arith.cmpf ogt, %8, %9 : vector<1x1x16xf32>
    %11 = vector.extract_strided_slice %7 {offsets = [0, 0, 0], sizes = [1, 16, 8], strides = [1, 1, 1]} : vector<1x16x96xbf16> to vector<1x16x8xbf16>
    %12 = vector.extract_strided_slice %7 {offsets = [0, 0, 32], sizes = [1, 16, 8], strides = [1, 1, 1]} : vector<1x16x96xbf16> to vector<1x16x8xbf16>
    %13 = vector.extract_strided_slice %7 {offsets = [0, 0, 64], sizes = [1, 16, 8], strides = [1, 1, 1]} : vector<1x16x96xbf16> to vector<1x16x8xbf16>
    "tpu.trace_start"() <{level = 10 : i32, message = "bqd,bkd->bqk"}> : () -> ()
    %cst_8 = arith.constant dense<0.000000e+00> : vector<1x16x16xf32>
    %14 = tpu.matmul %11, %12, %cst_8 {dimension_numbers = #tpu.dot_dimension_numbers<[2], [2], [1], [1], [0, 0, 0, 1, 1, 1], [0], [0]>} : vector<1x16x8xbf16>, vector<1x16x8xbf16>, vector<1x16x16xf32> -> vector<1x16x16xf32>
    %cst_9 = arith.constant -1.000000e+30 : f32
    "tpu.trace_stop"() : () -> ()
    %15 = vector.shape_cast %10 : vector<1x1x16xi1> to vector<1x1x16xi1>
    %16 = vector.broadcast %15 : vector<1x1x16xi1> to vector<1x16x16xi1>
    %17 = vector.broadcast %cst_9 : f32 to vector<1x16x16xf32>
    %18 = arith.select %16, %14, %17 : vector<1x16x16xi1>, vector<1x16x16xf32>
    %cst_10 = arith.constant dense<0xFF800000> : vector<1x16xf32>
    %19 = vector.multi_reduction <maximumf>, %18, %cst_10 [2] : vector<1x16x16xf32> to vector<1x16xf32>
    %20 = vector.shape_cast %19 : vector<1x16xf32> to vector<1x16x1xf32>
    %21 = vector.broadcast %20 : vector<1x16x1xf32> to vector<1x16x16xf32>
    %22 = arith.subf %18, %21 : vector<1x16x16xf32>
    %23 = math.exp %22 : vector<1x16x16xf32>
    %cst_11 = arith.constant dense<0.000000e+00> : vector<1x16xf32>
    %24 = vector.multi_reduction <add>, %23, %cst_11 [2] : vector<1x16x16xf32> to vector<1x16xf32>
    %25 = tpu.reciprocal %24 {approx = true} : vector<1x16xf32> -> vector<1x16xf32>
    %26 = arith.truncf %23 : vector<1x16x16xf32> to vector<1x16x16xbf16>
    "tpu.trace_start"() <{level = 10 : i32, message = "bkd,bqk->bdq"}> : () -> ()
    %cst_12 = arith.constant dense<0.000000e+00> : vector<1x8x16xf32>
    %27 = tpu.matmul %13, %26, %cst_12 {dimension_numbers = #tpu.dot_dimension_numbers<[1], [2], [2], [1], [0, 0, 0, 2, 1, 1], [0], [0]>} : vector<1x16x8xbf16>, vector<1x16x16xbf16>, vector<1x8x16xf32> -> vector<1x8x16xf32>
    "tpu.trace_stop"() : () -> ()
    %28 = vector.shape_cast %25 : vector<1x16xf32> to vector<1x1x16xf32>
    %29 = vector.broadcast %28 : vector<1x1x16xf32> to vector<1x8x16xf32>
    %30 = arith.mulf %27, %29 : vector<1x8x16xf32>
    %c0_13 = arith.constant 0 : index
    %c0_14 = arith.constant 0 : index
    %c0_15 = arith.constant 0 : index
    %31 = vector.load %arg4[%c0_13, %c0_14, %c0_15] : memref<1x32x16xf32, #tpu.memory_space<vmem>>, vector<1x8x16xf32>
    tpu.vector_store %arg4[%c0_13, %c0_14, %c0_15], %30 {strides = array<i32>} : memref<1x32x16xf32, #tpu.memory_space<vmem>>, vector<1x8x16xf32>,
    %32 = vector.extract_strided_slice %7 {offsets = [0, 0, 8], sizes = [1, 16, 8], strides = [1, 1, 1]} : vector<1x16x96xbf16> to vector<1x16x8xbf16>
    %33 = vector.extract_strided_slice %7 {offsets = [0, 0, 40], sizes = [1, 16, 8], strides = [1, 1, 1]} : vector<1x16x96xbf16> to vector<1x16x8xbf16>
    %34 = vector.extract_strided_slice %7 {offsets = [0, 0, 72], sizes = [1, 16, 8], strides = [1, 1, 1]} : vector<1x16x96xbf16> to vector<1x16x8xbf16>
    "tpu.trace_start"() <{level = 10 : i32, message = "bqd,bkd->bqk"}> : () -> ()
    %cst_16 = arith.constant dense<0.000000e+00> : vector<1x16x16xf32>
    %35 = tpu.matmul %32, %33, %cst_16 {dimension_numbers = #tpu.dot_dimension_numbers<[2], [2], [1], [1], [0, 0, 0, 1, 1, 1], [0], [0]>} : vector<1x16x8xbf16>, vector<1x16x8xbf16>, vector<1x16x16xf32> -> vector<1x16x16xf32>
    %cst_17 = arith.constant -1.000000e+30 : f32
    "tpu.trace_stop"() : () -> ()
    %36 = vector.shape_cast %10 : vector<1x1x16xi1> to vector<1x1x16xi1>
    %37 = vector.broadcast %36 : vector<1x1x16xi1> to vector<1x16x16xi1>
    %38 = vector.broadcast %cst_17 : f32 to vector<1x16x16xf32>
    %39 = arith.select %37, %35, %38 : vector<1x16x16xi1>, vector<1x16x16xf32>
    %cst_18 = arith.constant dense<0xFF800000> : vector<1x16xf32>
    %40 = vector.multi_reduction <maximumf>, %39, %cst_18 [2] : vector<1x16x16xf32> to vector<1x16xf32>
    %41 = vector.shape_cast %40 : vector<1x16xf32> to vector<1x16x1xf32>
    %42 = vector.broadcast %41 : vector<1x16x1xf32> to vector<1x16x16xf32>
    %43 = arith.subf %39, %42 : vector<1x16x16xf32>
    %44 = math.exp %43 : vector<1x16x16xf32>
    %cst_19 = arith.constant dense<0.000000e+00> : vector<1x16xf32>
    %45 = vector.multi_reduction <add>, %44, %cst_19 [2] : vector<1x16x16xf32> to vector<1x16xf32>
    %46 = tpu.reciprocal %45 {approx = true} : vector<1x16xf32> -> vector<1x16xf32>
    %47 = arith.truncf %44 : vector<1x16x16xf32> to vector<1x16x16xbf16>
    "tpu.trace_start"() <{level = 10 : i32, message = "bkd,bqk->bdq"}> : () -> ()
    %cst_20 = arith.constant dense<0.000000e+00> : vector<1x8x16xf32>
    %48 = tpu.matmul %34, %47, %cst_20 {dimension_numbers = #tpu.dot_dimension_numbers<[1], [2], [2], [1], [0, 0, 0, 2, 1, 1], [0], [0]>} : vector<1x16x8xbf16>, vector<1x16x16xbf16>, vector<1x8x16xf32> -> vector<1x8x16xf32>
    "tpu.trace_stop"() : () -> ()
    %49 = vector.shape_cast %46 : vector<1x16xf32> to vector<1x1x16xf32>
    %50 = vector.broadcast %49 : vector<1x1x16xf32> to vector<1x8x16xf32>
    %51 = arith.mulf %48, %50 : vector<1x8x16xf32>
    %c0_21 = arith.constant 0 : index
    %c8 = arith.constant 8 : index
    %c0_22 = arith.constant 0 : index
    %52 = vector.load %arg4[%c0_21, %c8, %c0_22] : memref<1x32x16xf32, #tpu.memory_space<vmem>>, vector<1x8x16xf32>
    tpu.vector_store %arg4[%c0_21, %c8, %c0_22], %51 {strides = array<i32>} : memref<1x32x16xf32, #tpu.memory_space<vmem>>, vector<1x8x16xf32>,
    %53 = vector.extract_strided_slice %7 {offsets = [0, 0, 16], sizes = [1, 16, 8], strides = [1, 1, 1]} : vector<1x16x96xbf16> to vector<1x16x8xbf16>
    %54 = vector.extract_strided_slice %7 {offsets = [0, 0, 48], sizes = [1, 16, 8], strides = [1, 1, 1]} : vector<1x16x96xbf16> to vector<1x16x8xbf16>
    %55 = vector.extract_strided_slice %7 {offsets = [0, 0, 80], sizes = [1, 16, 8], strides = [1, 1, 1]} : vector<1x16x96xbf16> to vector<1x16x8xbf16>
    "tpu.trace_start"() <{level = 10 : i32, message = "bqd,bkd->bqk"}> : () -> ()
    %cst_23 = arith.constant dense<0.000000e+00> : vector<1x16x16xf32>
    %56 = tpu.matmul %53, %54, %cst_23 {dimension_numbers = #tpu.dot_dimension_numbers<[2], [2], [1], [1], [0, 0, 0, 1, 1, 1], [0], [0]>} : vector<1x16x8xbf16>, vector<1x16x8xbf16>, vector<1x16x16xf32> -> vector<1x16x16xf32>
    %cst_24 = arith.constant -1.000000e+30 : f32
    "tpu.trace_stop"() : () -> ()
    %57 = vector.shape_cast %10 : vector<1x1x16xi1> to vector<1x1x16xi1>
    %58 = vector.broadcast %57 : vector<1x1x16xi1> to vector<1x16x16xi1>
    %59 = vector.broadcast %cst_24 : f32 to vector<1x16x16xf32>
    %60 = arith.select %58, %56, %59 : vector<1x16x16xi1>, vector<1x16x16xf32>
    %cst_25 = arith.constant dense<0xFF800000> : vector<1x16xf32>
    %61 = vector.multi_reduction <maximumf>, %60, %cst_25 [2] : vector<1x16x16xf32> to vector<1x16xf32>
    %62 = vector.shape_cast %61 : vector<1x16xf32> to vector<1x16x1xf32>
    %63 = vector.broadcast %62 : vector<1x16x1xf32> to vector<1x16x16xf32>
    %64 = arith.subf %60, %63 : vector<1x16x16xf32>
    %65 = math.exp %64 : vector<1x16x16xf32>
    %cst_26 = arith.constant dense<0.000000e+00> : vector<1x16xf32>
    %66 = vector.multi_reduction <add>, %65, %cst_26 [2] : vector<1x16x16xf32> to vector<1x16xf32>
    %67 = tpu.reciprocal %66 {approx = true} : vector<1x16xf32> -> vector<1x16xf32>
    %68 = arith.truncf %65 : vector<1x16x16xf32> to vector<1x16x16xbf16>
    "tpu.trace_start"() <{level = 10 : i32, message = "bkd,bqk->bdq"}> : () -> ()
    %cst_27 = arith.constant dense<0.000000e+00> : vector<1x8x16xf32>
    %69 = tpu.matmul %55, %68, %cst_27 {dimension_numbers = #tpu.dot_dimension_numbers<[1], [2], [2], [1], [0, 0, 0, 2, 1, 1], [0], [0]>} : vector<1x16x8xbf16>, vector<1x16x16xbf16>, vector<1x8x16xf32> -> vector<1x8x16xf32>
    "tpu.trace_stop"() : () -> ()
    %70 = vector.shape_cast %67 : vector<1x16xf32> to vector<1x1x16xf32>
    %71 = vector.broadcast %70 : vector<1x1x16xf32> to vector<1x8x16xf32>
    %72 = arith.mulf %69, %71 : vector<1x8x16xf32>
    %c0_28 = arith.constant 0 : index
    %c16 = arith.constant 16 : index
    %c0_29 = arith.constant 0 : index
    %73 = vector.load %arg4[%c0_28, %c16, %c0_29] : memref<1x32x16xf32, #tpu.memory_space<vmem>>, vector<1x8x16xf32>
    tpu.vector_store %arg4[%c0_28, %c16, %c0_29], %72 {strides = array<i32>} : memref<1x32x16xf32, #tpu.memory_space<vmem>>, vector<1x8x16xf32>,
    %74 = vector.extract_strided_slice %7 {offsets = [0, 0, 24], sizes = [1, 16, 8], strides = [1, 1, 1]} : vector<1x16x96xbf16> to vector<1x16x8xbf16>
    %75 = vector.extract_strided_slice %7 {offsets = [0, 0, 56], sizes = [1, 16, 8], strides = [1, 1, 1]} : vector<1x16x96xbf16> to vector<1x16x8xbf16>
    %76 = vector.extract_strided_slice %7 {offsets = [0, 0, 88], sizes = [1, 16, 8], strides = [1, 1, 1]} : vector<1x16x96xbf16> to vector<1x16x8xbf16>
    "tpu.trace_start"() <{level = 10 : i32, message = "bqd,bkd->bqk"}> : () -> ()
    %cst_30 = arith.constant dense<0.000000e+00> : vector<1x16x16xf32>
    %77 = tpu.matmul %74, %75, %cst_30 {dimension_numbers = #tpu.dot_dimension_numbers<[2], [2], [1], [1], [0, 0, 0, 1, 1, 1], [0], [0]>} : vector<1x16x8xbf16>, vector<1x16x8xbf16>, vector<1x16x16xf32> -> vector<1x16x16xf32>
    %cst_31 = arith.constant -1.000000e+30 : f32
    "tpu.trace_stop"() : () -> ()
    %78 = vector.shape_cast %10 : vector<1x1x16xi1> to vector<1x1x16xi1>
    %79 = vector.broadcast %78 : vector<1x1x16xi1> to vector<1x16x16xi1>
    %80 = vector.broadcast %cst_31 : f32 to vector<1x16x16xf32>
    %81 = arith.select %79, %77, %80 : vector<1x16x16xi1>, vector<1x16x16xf32>
    %cst_32 = arith.constant dense<0xFF800000> : vector<1x16xf32>
    %82 = vector.multi_reduction <maximumf>, %81, %cst_32 [2] : vector<1x16x16xf32> to vector<1x16xf32>
    %83 = vector.shape_cast %82 : vector<1x16xf32> to vector<1x16x1xf32>
    %84 = vector.broadcast %83 : vector<1x16x1xf32> to vector<1x16x16xf32>
    %85 = arith.subf %81, %84 : vector<1x16x16xf32>
    %86 = math.exp %85 : vector<1x16x16xf32>
    %cst_33 = arith.constant dense<0.000000e+00> : vector<1x16xf32>
    %87 = vector.multi_reduction <add>, %86, %cst_33 [2] : vector<1x16x16xf32> to vector<1x16xf32>
    %88 = tpu.reciprocal %87 {approx = true} : vector<1x16xf32> -> vector<1x16xf32>
    %89 = arith.truncf %86 : vector<1x16x16xf32> to vector<1x16x16xbf16>
    "tpu.trace_start"() <{level = 10 : i32, message = "bkd,bqk->bdq"}> : () -> ()
    %cst_34 = arith.constant dense<0.000000e+00> : vector<1x8x16xf32>
    %90 = tpu.matmul %76, %89, %cst_34 {dimension_numbers = #tpu.dot_dimension_numbers<[1], [2], [2], [1], [0, 0, 0, 2, 1, 1], [0], [0]>} : vector<1x16x8xbf16>, vector<1x16x16xbf16>, vector<1x8x16xf32> -> vector<1x8x16xf32>
    "tpu.trace_stop"() : () -> ()
    %91 = vector.shape_cast %88 : vector<1x16xf32> to vector<1x1x16xf32>
    %92 = vector.broadcast %91 : vector<1x1x16xf32> to vector<1x8x16xf32>
    %93 = arith.mulf %90, %92 : vector<1x8x16xf32>
    %c0_35 = arith.constant 0 : index
    %c24 = arith.constant 24 : index
    %c0_36 = arith.constant 0 : index
    %94 = vector.load %arg4[%c0_35, %c24, %c0_36] : memref<1x32x16xf32, #tpu.memory_space<vmem>>, vector<1x8x16xf32>
    tpu.vector_store %arg4[%c0_35, %c24, %c0_36], %93 {strides = array<i32>} : memref<1x32x16xf32, #tpu.memory_space<vmem>>, vector<1x8x16xf32>,
    return
  }
  func.func @transform_0(%arg0: i32) -> (i32, i32, i32) {
    %c0_i32 = arith.constant 0 : i32
    %c0_i32_0 = arith.constant 0 : i32
    %c0_i32_1 = arith.constant 0 : i32
    return %arg0, %c0_i32, %c0_i32_0 : i32, i32, i32
  }
  func.func @transform_1(%arg0: i32) -> (i32, i32, i32) {
    %c0_i32 = arith.constant 0 : i32
    %c0_i32_0 = arith.constant 0 : i32
    %c0_i32_1 = arith.constant 0 : i32
    return %arg0, %c0_i32, %c0_i32_0 : i32, i32, i32
  }
  func.func @transform_2(%arg0: i32) -> (i32, i32) {
    %c0_i32 = arith.constant 0 : i32
    %c0_i32_0 = arith.constant 0 : i32
    %c0_i32_1 = arith.constant 0 : i32
    return %c0_i32, %c0_i32_0 : i32, i32
  }
  func.func @transform_3(%arg0: i32) -> (i32, i32, i32) {
    %c0_i32 = arith.constant 0 : i32
    %c0_i32_0 = arith.constant 0 : i32
    %c0_i32_1 = arith.constant 0 : i32
    return %arg0, %c0_i32, %c0_i32_0 : i32, i32, i32
  }
}

</mosaic_0001>

<llo_original>
// kernel: tpu_custom_call.1
$region0: #{tpu_custom_call.1}
  #allocation0 [shape = 'u32[]', space=smem, size = 0x4, offset = 0x4, fixed_abs, tag = 'smem constant byte address 0x4 - core index']
  #allocation1 [shape = 'u32[144,128]{1,0:T(1,128)}', space=vmem, size = 0x12000, scoped, tag = 'internal scratch']
  %s0 = inlined_call_operand.vmem [shape: f32[2,32,16], index: 0, kind: input, shape index: {}]
  %s1 = inlined_call_operand.vmem [shape: f32[2,1,16], index: 1, kind: input, shape index: {}]
  %s2 = inlined_call_operand.vmem [shape: bf16[32,96], index: 2, kind: input, shape index: {}]
  %s3 = inlined_call_operand.vmem [shape: f32[2,32,16], index: 3, kind: output, shape index: {}]
  %s4 = sld [smem:[#allocation0]]
  $region45: #{tpu_custom_call.1} parent=0
    _
  %s6 = ssub.s32 1, %s4
  %s7 = scalar_select 0, %s6, %s4
  loop: start=0, step=1, limit=4
  $region2: #{tpu_custom_call.1} parent=0 // loop_pre_header
    _
  $region3: #{tpu_custom_call.1} parent=0 // loop_header
    %s9 = sphi 0, %s13
    %p10 = scmp.ge.s32.totalorder %s9, 4
    %s19 = sphi 0, %s21
    %s22 = sphi 0, %s19
    %s23 = sphi 0, %s22
    %s39 = sphi 0, %s23
    %s45 = sphi 0, %s47
    %s48 = sphi 0, %s45
    %s49 = sphi 0, %s48
    %s65 = sphi 0, %s49
    %s69 = sphi 0, %s69
    %s71 = sphi 0, %s69
    %s72 = sphi 0, %s71
    %s86 = sphi 0, %s72
    %s92 = sphi 0, %s94
    %s95 = sphi 0, %s92
    %s96 = sphi 0, %s95
    %s112 = sphi 0, %s96
  $region4: #{tpu_custom_call.1} parent=0 // loop_header_branch
    %12 = sbr.rel (%p10) target = $region8
  $region5: #{tpu_custom_call.1} parent=0 // loop_body
    %s14 = ssub.s32 %s9, 1
    %s15 = ssub.s32 %s9, 2
    %s16 = sadd.s32 %s9, 1
    %s17 = ssub.s32 %s9, %s16
    %p18 = scmp.eq.s32.totalorder %s17, 0
    %s20 = sadd.s32 %s19, 1
    %s21 = scalar_select %p18, %s19, %s20
    %p24 = pneg %p18
    %p25 = scmp.eq.s32.totalorder %s9, 1
    %p26 = por %p24, %p25
    %p27 = scmp.ne.s32.totalorder %s19, %s22
    %p28 = scmp.eq.s32.totalorder %s9, 0
    %p29 = por %p27, %p28
    %p30 = scmp.ne.s32.totalorder %s19, %s22
    %p31 = scmp.eq.s32.totalorder %s14, 1
    %p32 = por %p30, %p31
    %p33 = scmp.ne.s32.totalorder %s22, %s23
    %p34 = scmp.eq.s32.totalorder %s14, 0
    %p35 = por %p33, %p34
    %p36 = scmp.ne.s32.totalorder %s22, %s23
    %p37 = scmp.eq.s32.totalorder %s15, 1
    %p38 = por %p36, %p37
    %p40 = scmp.ne.s32.totalorder %s23, %s39
    %p41 = scmp.eq.s32.totalorder %s15, 0
    %p42 = por %p40, %p41
    %s43 = ssub.s32 %s9, %s16
    %p44 = scmp.eq.s32.totalorder %s43, 0
    %s46 = sadd.s32 %s45, 1
    %s47 = scalar_select %p44, %s45, %s46
    %p50 = pneg %p44
    %p51 = scmp.eq.s32.totalorder %s9, 1
    %p52 = por %p50, %p51
    %p53 = scmp.ne.s32.totalorder %s45, %s48
    %p54 = scmp.eq.s32.totalorder %s9, 0
    %p55 = por %p53, %p54
    %p56 = scmp.ne.s32.totalorder %s45, %s48
    %p57 = scmp.eq.s32.totalorder %s14, 1
    %p58 = por %p56, %p57
    %p59 = scmp.ne.s32.totalorder %s48, %s49
    %p60 = scmp.eq.s32.totalorder %s14, 0
    %p61 = por %p59, %p60
    %p62 = scmp.ne.s32.totalorder %s48, %s49
    %p63 = scmp.eq.s32.totalorder %s15, 1
    %p64 = por %p62, %p63
    %p66 = scmp.ne.s32.totalorder %s49, %s65
    %p67 = scmp.eq.s32.totalorder %s15, 0
    %p68 = por %p66, %p67
    %s70 = sadd.s32 %s69, 1
    %p73 = scmp.eq.s32.totalorder %s9, 1
    %p74 = scmp.ne.s32.totalorder %s69, %s71
    %p75 = scmp.eq.s32.totalorder %s9, 0
    %p76 = por %p74, %p75
    %p77 = scmp.ne.s32.totalorder %s69, %s71
    %p78 = scmp.eq.s32.totalorder %s14, 1
    %p79 = por %p77, %p78
    %p80 = scmp.ne.s32.totalorder %s71, %s72
    %p81 = scmp.eq.s32.totalorder %s14, 0
    %p82 = por %p80, %p81
    %p83 = scmp.ne.s32.totalorder %s71, %s72
    %p84 = scmp.eq.s32.totalorder %s15, 1
    %p85 = por %p83, %p84
    %p87 = scmp.ne.s32.totalorder %s72, %s86
    %p88 = scmp.eq.s32.totalorder %s15, 0
    %p89 = por %p87, %p88
    %s90 = ssub.s32 %s9, %s16
    %p91 = scmp.eq.s32.totalorder %s90, 0
    %s93 = sadd.s32 %s92, 1
    %s94 = scalar_select %p91, %s92, %s93
    %p97 = pneg %p91
    %p98 = scmp.eq.s32.totalorder %s9, 1
    %p99 = por %p97, %p98
    %p100 = scmp.ne.s32.totalorder %s92, %s95
    %p101 = scmp.eq.s32.totalorder %s9, 0
    %p102 = por %p100, %p101
    %p103 = scmp.ne.s32.totalorder %s92, %s95
    %p104 = scmp.eq.s32.totalorder %s14, 1
    %p105 = por %p103, %p104
    %p106 = scmp.ne.s32.totalorder %s95, %s96
    %p107 = scmp.eq.s32.totalorder %s14, 0
    %p108 = por %p106, %p107
    %p109 = scmp.ne.s32.totalorder %s95, %s96
    %p110 = scmp.eq.s32.totalorder %s15, 1
    %p111 = por %p109, %p110
    %p113 = scmp.ne.s32.totalorder %s96, %s112
    %p114 = scmp.eq.s32.totalorder %s15, 0
    %p115 = por %p113, %p114
    %p116 = scmp.le.s32.totalorder 1, %s9
    %p117 = scmp.lt.s32.totalorder %s9, 3
    %p118 = pnand %p116, %p117
    %p119 = pneg %p118
    // Predicated region
    $region9: #{tpu_custom_call.1} parent=5 // pred_check
      _
    $region10: #{tpu_custom_call.1} parent=5 // pred_check_branch
      %121 = sbr.rel (%p118) target = $region12
    $region11: #{tpu_custom_call.1} parent=5 // pred_region
      %s122 = ssub.s32 %s9, 1
      // Predicated region
      $region13: #{tpu_custom_call.1} parent=11 // pred_check
        %p123 = pneg %p82
      $region14: #{tpu_custom_call.1} parent=11 // pred_check_branch
        %125 = sbr.rel (%p123) target = $region16
      $region15: #{tpu_custom_call.1} parent=11 // pred_region
        _
      $region16: #{tpu_custom_call.1} parent=11 // pred_fallthru
        _
    $region12: #{tpu_custom_call.1} parent=5 // pred_fallthru
      _
    %p126 = scmp.lt.s32.totalorder %s9, 2
    // Predicated region
    $region17: #{tpu_custom_call.1} parent=5 // pred_check
      %p127 = pneg %p126
    $region18: #{tpu_custom_call.1} parent=5 // pred_check_branch
      %129 = sbr.rel (%p127) target = $region20
    $region19: #{tpu_custom_call.1} parent=5 // pred_region
      // Predicated region
      $region21: #{tpu_custom_call.1} parent=19 // pred_check
        %p130 = pneg %p29
      $region22: #{tpu_custom_call.1} parent=19 // pred_check_branch
        %132 = sbr.rel (%p130) target = $region24
      $region23: #{tpu_custom_call.1} parent=19 // pred_region
        %p133 = scmp.lt.s32.totalorder %s9, 1
        %s134 = scalar_select %p133, %s9, 1
        %s135 = smul.addr %s134, 4
        %s136 = smul.addr %s135, 8
        %s137 = scalar_lea.vmem %s0, %s136
      $region24: #{tpu_custom_call.1} parent=19 // pred_fallthru
        _
      // Predicated region
      $region25: #{tpu_custom_call.1} parent=19 // pred_check
        %p138 = pneg %p55
      $region26: #{tpu_custom_call.1} parent=19 // pred_check_branch
        %140 = sbr.rel (%p138) target = $region28
      $region27: #{tpu_custom_call.1} parent=19 // pred_region
        %p141 = scmp.lt.s32.totalorder %s9, 1
        %s142 = scalar_select %p141, %s9, 1
        %s143 = scalar_lea.vmem %s1, %s142
      $region28: #{tpu_custom_call.1} parent=19 // pred_fallthru
        _
    $region20: #{tpu_custom_call.1} parent=5 // pred_fallthru
      _
    %p144 = scmp.le.s32.totalorder 1, %s9
    %p145 = scmp.lt.s32.totalorder %s9, 3
    %p146 = pnand %p144, %p145
    %p147 = pneg %p146
    // Predicated region
    $region29: #{tpu_custom_call.1} parent=5 // pred_check
      _
    $region30: #{tpu_custom_call.1} parent=5 // pred_check_branch
      %149 = sbr.rel (%p146) target = $region32
    $region31: #{tpu_custom_call.1} parent=5 // pred_region
      %s150 = ssub.s32 %s9, 1
      %p151 = scmp.lt.s32.totalorder %s14, 1
      %s152 = scalar_select %p151, %s14, 1
      %s153 = smul.addr %s152, 4
      %s154 = smul.addr %s153, 8
      %s155 = scalar_lea.vmem %s0, %s154
      %p156 = pneg %p35
      %p157 = pneg %p32
      %p158 = scmp.lt.s32.totalorder %s14, 1
      %s159 = scalar_select %p158, %s14, 1
      %s160 = scalar_lea.vmem %s1, %s159
      %p161 = pneg %p61
      %p162 = pneg %p58
      %p163 = pneg %p82
      %p164 = pneg %p79
      %p165 = pneg %p108
      %p166 = pneg %p105
      %p167 = scmp.lt.s32.totalorder %s14, 1
      %s168 = scalar_select %p167, %s14, 1
      %s169 = smul.addr %s168, 4
      %s170 = smul.addr %s169, 8
      %s171 = scalar_lea.vmem %s3, %s170
      %p172 = scmp.lt.s32.totalorder %s14, 1
      %s173 = scalar_select %p172, %s14, 1
      %s174 = smul.addr %s173, 4
      %s175 = smul.addr %s174, 8
      %s176 = scalar_lea.vmem %s0, %s175
      %p177 = scmp.lt.s32.totalorder %s14, 1
      %s178 = scalar_select %p177, %s14, 1
      %s179 = scalar_lea.vmem %s1, %s178
      %p180 = scmp.lt.s32.totalorder %s14, 1
      %s181 = scalar_select %p180, %s14, 1
      %s182 = smul.addr %s181, 4
      %s183 = smul.addr %s182, 8
      %s184 = scalar_lea.vmem %s3, %s183
      %v186 = vld [vmem:[%s176] sm:$0xff]
      %v187 = vld [vmem:[%s176 + $0x8] sm:$0xff]
      %v188 = vld [vmem:[%s176 + $0x10] sm:$0xff]
      %v189 = vld [vmem:[%s176 + $0x18] sm:$0xff]
      %190 = vxpose.xlu0.b32.start [1/16] %v186, 128
      %191 = vxpose.xlu0.b32.cont [2/16] %v187, 128
      %192 = vxpose.xlu0.b32.cont [3/16] %v188, 128
      %193 = vxpose.xlu0.b32.cont [4/16] %v189, 128
      %194 = vxpose.xlu0.b32.cont [5/16] 0.0, 128
      %195 = vxpose.xlu0.b32.cont [6/16] 0.0, 128
      %196 = vxpose.xlu0.b32.cont [7/16] 0.0, 128
      %197 = vxpose.xlu0.b32.cont [8/16] 0.0, 128
      %198 = vxpose.xlu0.b32.cont [9/16] 0.0, 128
      %199 = vxpose.xlu0.b32.cont [10/16] 0.0, 128
      %200 = vxpose.xlu0.b32.cont [11/16] 0.0, 128
      %201 = vxpose.xlu0.b32.cont [12/16] 0.0, 128
      %202 = vxpose.xlu0.b32.cont [13/16] 0.0, 128
      %203 = vxpose.xlu0.b32.cont [14/16] 0.0, 128
      %204 = vxpose.xlu0.b32.cont [15/16] 0.0, 128
      %205 = vxpose.xlu0.b32.end [16/16] 0.0, 128
      %v206 = vpop.trf.xlu0
      %v207 = vpop.trf.xlu0
      %v208 = vpop.trf.xlu0
      %v209 = vpop.trf.xlu0
      %v210 = vpop.trf.xlu0
      %v211 = vpop.trf.xlu0
      %v212 = vpop.trf.xlu0
      %v213 = vpop.trf.xlu0
      %v214 = vpop.trf.xlu0
      %v215 = vpop.trf.xlu0
      %v216 = vpop.trf.xlu0
      %v217 = vpop.trf.xlu0
      %v218 = vpop.trf.xlu0
      %v219 = vpop.trf.xlu0
      %v220 = vpop.trf.xlu0
      %v221 = vpop.trf.xlu0
      %v222 = vpack.c.bf16 %v207, %v206
      %v223 = vld [vmem:[%s2] sm:$0xf]
      %v224 = vld [vmem:[%s2 + $0x4] sm:$0xf]
      %v225 = vld [vmem:[%s2 + $0x8] sm:$0xf]
      %v226 = vld [vmem:[%s2 + $0xc] sm:$0xf]
      %v231 = vunpack.c.l.b16 %v223
      %v232 = vunpack.c.l.b16 %v224
      %v233 = vunpack.c.l.b16 %v225
      %v234 = vunpack.c.l.b16 %v226
      %v235 = vpack.c.b16 %v232, %v231
      %v236 = vpack.c.b16 %v234, %v233
      %vm239 = vcmask 261120
      %v241 = vsel %vm239, %v222, 0
      %243 = vmatprep.subr.bf16.mxu0 0
      %244 = vmatpush1.bf16.msra.mxu0 0
      %245 = vmatprep.subr.bf16.mxu0 0
      %246 = vmatpush1.bf16.msra.mxu0 0
      %247 = vmatprep.subr.bf16.mxu0 0
      %248 = vmatpush1.bf16.msra.mxu0 0
      %249 = vmatprep.subr.bf16.mxu0 0
      %250 = vmatpush1.bf16.msra.mxu0 0
      %251 = vmatprep.subr.bf16.mxu0 0
      %252 = vmatpush1.bf16.msra.mxu0 0
      %253 = vmatprep.subr.bf16.mxu0 0
      %254 = vmatpush1.bf16.msra.mxu0 0
      %255 = vmatprep.subr.bf16.mxu0 0
      %256 = vmatpush1.bf16.msra.mxu0 %v236
      %257 = vmatprep.subr.bf16.mxu0 0
      %258 = vmatpush1.bf16.msra.mxu0 %v235
      %259 = vmatprep.subr.bf16.mxu0 0
      %260 = vmatpush2.bf16.msra.mxu0 0
      %261 = vmatprep.subr.bf16.mxu0 0
      %262 = vmatpush2.bf16.msra.mxu0 0
      %263 = vmatprep.subr.bf16.mxu0 0
      %264 = vmatpush2.bf16.msra.mxu0 0
      %265 = vmatprep.subr.bf16.mxu0 0
      %266 = vmatpush2.bf16.msra.mxu0 0
      %267 = vmatprep.subr.bf16.mxu0 0
      %268 = vmatpush2.bf16.msra.mxu0 0
      %269 = vmatprep.subr.bf16.mxu0 0
      %270 = vmatpush2.bf16.msra.mxu0 0
      %271 = vmatprep.subr.bf16.mxu0 0
      %272 = vmatpush2.bf16.msra.mxu0 0
      %273 = vmatprep.subr.bf16.mxu0 0
      %274 = vmatpush2.bf16.msra.mxu0 0
      %275 = vmatprep.mubr.bf16.mxu0 0
      %276 = vmatmul.mubr.bf16.gmra.mxu0 %v241
      %v277 = vpop.f32.mrf.mxu0
      %v278 = vadd.f32 0.0, %v277
      %v279 = vpop.f32.mrf.mxu0
      %v280 = vpop.f32.mrf.mxu0
      %v281 = vadd.f32 0.0, %v280
      %v282 = vpop.f32.mrf.mxu0
      %283 = vdwg.mxu0
      %v284 = vpack.c.bf16 %v281, %v278
      %v285 = vld [vmem:[%s179] sm:$0x1]
      %vm286 = vcmp.gt.f32.partialorder %v285, 0.0
      %288 = vrot.lane.b32.xlu0 %v284, 96
      %v289 = vpop.permute.xlu0 %288
      %vm290 = vcmask 64512
      %v292 = vsel %vm290, %v284, 0
      %v295 = vsel %vm290, %v289, 0
      %297 = vmatprep.subr.bf16.mxu0 0
      %298 = vmatpush1.bf16.xpose.msra.mxu0 0
      %299 = vmatprep.subr.bf16.mxu0 0
      %300 = vmatpush1.bf16.xpose.msra.mxu0 0
      %301 = vmatprep.subr.bf16.mxu0 0
      %302 = vmatpush1.bf16.xpose.msra.mxu0 0
      %303 = vmatprep.subr.bf16.mxu0 0
      %304 = vmatpush1.bf16.xpose.msra.mxu0 0
      %305 = vmatprep.subr.bf16.mxu0 0
      %306 = vmatpush1.bf16.xpose.msra.mxu0 0
      %307 = vmatprep.subr.bf16.mxu0 0
      %308 = vmatpush1.bf16.xpose.msra.mxu0 0
      %309 = vmatprep.subr.bf16.mxu0 0
      %310 = vmatpush1.bf16.xpose.msra.mxu0 0
      %311 = vmatprep.subr.bf16.mxu0 0
      %312 = vmatpush1.bf16.xpose.msra.mxu0 %v295
      %313 = vmatprep.subr.bf16.mxu0 0
      %314 = vmatpush2.bf16.xpose.msra.mxu0 0
      %315 = vmatprep.subr.bf16.mxu0 0
      %316 = vmatpush2.bf16.xpose.msra.mxu0 0
      %317 = vmatprep.subr.bf16.mxu0 0
      %318 = vmatpush2.bf16.xpose.msra.mxu0 0
      %319 = vmatprep.subr.bf16.mxu0 0
      %320 = vmatpush2.bf16.xpose.msra.mxu0 0
      %321 = vmatprep.subr.bf16.mxu0 0
      %322 = vmatpush2.bf16.xpose.msra.mxu0 0
      %323 = vmatprep.subr.bf16.mxu0 0
      %324 = vmatpush2.bf16.xpose.msra.mxu0 0
      %325 = vmatprep.subr.bf16.mxu0 0
      %326 = vmatpush2.bf16.xpose.msra.mxu0 0
      %327 = vmatprep.subr.bf16.mxu0 0
      %328 = vmatpush2.bf16.xpose.msra.mxu0 0
      %329 = vmatprep.mubr.bf16.mxu0 0
      %330 = vmatmul.mubr.bf16.gmra.mxu0 %v292
      %v331 = vpop.f32.mrf.mxu0
      %v332 = vadd.f32 0.0, %v331
      %v333 = vpop.f32.mrf.mxu0
      %v334 = vpop.f32.mrf.mxu0
      %v335 = vadd.f32 0.0, %v334
      %v336 = vpop.f32.mrf.mxu0
      %337 = vdwg.mxu0
      %v338 = vsel %vm286, 1, 0
      %v339 = vlaneseq
      %v340 = vshrl.u32 %v339, 7
      %v341 = vsub.s32 0, %v340
      %v342 = vrot.slane %v338, %v341
      %vm343 = vcmp.eq.s32.totalorder %v342, 1
      %v344 = vsel %vm343, %v332, -1e+30
      %v345 = vsel %vm343, %v335, -1e+30
      %vm346 = vcmask 130048
      %v347 = vsel %vm346, %v344, -inf
      %348 = vmax.xlane.f32.xlu0 %v347
      %v349 = vpop.xlane.xlu0 %348
      %v350 = vsel %vm346, %v345, -inf
      %351 = vmax.xlane.f32.xlu0 %v350
      %v352 = vpop.xlane.xlu0 %351
      %v353 = vsub.f32 %v344, %v349
      %v354 = vsub.f32 %v345, %v352
      %v355 = vmul.f32 %v353, 1.442695
      %v356 = vpow.pop %v355
      %v357 = vmul.f32 %v354, 1.442695
      %v358 = vpow.pop %v357
      %v359 = vsel %vm346, %v356, 0.0
      %360 = vadd.xlane.f32.xlu0 %v359
      %v361 = vpop.xlane.xlu0 %360
      %v362 = vsel %vm346, %v358, 0.0
      %363 = vadd.xlane.f32.xlu0 %v362
      %v364 = vpop.xlane.xlu0 %363
      %v365 = vrcp.pop %v361
      %v366 = vrcp.pop %v364
      %v367 = vpack.c.bf16 %v358, %v356
      %368 = vrot.lane.b32.xlu0 %v284, 64
      %v369 = vpop.permute.xlu0 %368
      %371 = vxpose.xlu0.c.b16.start [1/8] %v369, 128
      %372 = vxpose.xlu0.c.b16.cont [2/8] 0, 128
      %373 = vxpose.xlu0.c.b16.cont [3/8] 0, 128
      %374 = vxpose.xlu0.c.b16.cont [4/8] 0, 128
      %375 = vxpose.xlu0.c.b16.cont [5/8] 0, 128
      %376 = vxpose.xlu0.c.b16.cont [6/8] 0, 128
      %377 = vxpose.xlu0.c.b16.cont [7/8] 0, 128
      %378 = vxpose.xlu0.c.b16.end [8/8] 0, 128
      %v379 = vpop.trf.xlu0
      %v380 = vpop.trf.xlu0
      %v381 = vpop.trf.xlu0
      %v382 = vpop.trf.xlu0
      %v383 = vpop.trf.xlu0
      %v384 = vpop.trf.xlu0
      %v385 = vpop.trf.xlu0
      %v386 = vpop.trf.xlu0
      %v388 = vsel %vm346, %v379, 0
      %v391 = vsel %vm346, %v367, 0
      %393 = vmatprep.subr.bf16.mxu0 0
      %394 = vmatpush1.bf16.xpose.msra.mxu0 0
      %395 = vmatprep.subr.bf16.mxu0 0
      %396 = vmatpush1.bf16.xpose.msra.mxu0 0
      %397 = vmatprep.subr.bf16.mxu0 0
      %398 = vmatpush1.bf16.xpose.msra.mxu0 0
      %399 = vmatprep.subr.bf16.mxu0 0
      %400 = vmatpush1.bf16.xpose.msra.mxu0 0
      %401 = vmatprep.subr.bf16.mxu0 0
      %402 = vmatpush1.bf16.xpose.msra.mxu0 0
      %403 = vmatprep.subr.bf16.mxu0 0
      %404 = vmatpush1.bf16.xpose.msra.mxu0 0
      %405 = vmatprep.subr.bf16.mxu0 0
      %406 = vmatpush1.bf16.xpose.msra.mxu0 0
      %407 = vmatprep.subr.bf16.mxu0 0
      %408 = vmatpush1.bf16.xpose.msra.mxu0 %v391
      %409 = vmatprep.subr.bf16.mxu0 0
      %410 = vmatpush2.bf16.xpose.msra.mxu0 0
      %411 = vmatprep.subr.bf16.mxu0 0
      %412 = vmatpush2.bf16.xpose.msra.mxu0 0
      %413 = vmatprep.subr.bf16.mxu0 0
      %414 = vmatpush2.bf16.xpose.msra.mxu0 0
      %415 = vmatprep.subr.bf16.mxu0 0
      %416 = vmatpush2.bf16.xpose.msra.mxu0 0
      %417 = vmatprep.subr.bf16.mxu0 0
      %418 = vmatpush2.bf16.xpose.msra.mxu0 0
      %419 = vmatprep.subr.bf16.mxu0 0
      %420 = vmatpush2.bf16.xpose.msra.mxu0 0
      %421 = vmatprep.subr.bf16.mxu0 0
      %422 = vmatpush2.bf16.xpose.msra.mxu0 0
      %423 = vmatprep.subr.bf16.mxu0 0
      %424 = vmatpush2.bf16.xpose.msra.mxu0 0
      %425 = vmatprep.mubr.bf16.mxu0 0
      %426 = vmatmul.mubr.bf16.gmra.mxu0 %v388
      %v427 = vpop.f32.mrf.mxu0
      %v428 = vadd.f32 0.0, %v427
      %v429 = vpop.f32.mrf.mxu0
      %v430 = vpop.f32.mrf.mxu0
      %v431 = vpop.f32.mrf.mxu0
      %432 = vdwg.mxu0
      %v435 = vlaneseq
      %v436 = vand.u32 %v435, 127
      %v437 = vlaneseq
      %v438 = vshrl.u32 %v437, 7
      %v439 = vsub.s32 %v436, %v438
      %v440 = vrot.slane %v365, %v439
      %v441 = vadd.s32 %v436, 4294967288
      %v442 = vlaneseq
      %v443 = vshrl.u32 %v442, 7
      %v444 = vsub.s32 %v441, %v443
      %v445 = vrot.slane %v366, %v444
      %vm446 = vcmask 130112
      %v447 = vsel %vm446, %v445, %v440
      %vm448 = vcmask 1042434
      %v449 = vsel %vm448, %v447, %v447
      %vm450 = vcmask 1043459
      %v451 = vsel %vm450, %v447, %v449
      %vm452 = vcmask 1044484
      %v453 = vsel %vm452, %v447, %v451
      %vm454 = vcmask 1045509
      %v455 = vsel %vm454, %v447, %v453
      %vm456 = vcmask 1046534
      %v457 = vsel %vm456, %v447, %v455
      %vm458 = vcmask 1047559
      %v459 = vsel %vm458, %v447, %v457
      %v461 = vmul.f32 %v428, %v459
      %462 = vst.msk [vmem:[%s184] sm:$0xff] %vm346, %v461
      %463 = vrot.lane.b32.xlu0 %v284, 120
      %v464 = vpop.permute.xlu0 %463
      %465 = vrot.lane.b32.xlu0 %v284, 88
      %v466 = vpop.permute.xlu0 %465
      %v468 = vsel %vm290, %v464, 0
      %v471 = vsel %vm290, %v466, 0
      %473 = vmatprep.subr.bf16.mxu0 0
      %474 = vmatpush1.bf16.xpose.msra.mxu0 0
      %475 = vmatprep.subr.bf16.mxu0 0
      %476 = vmatpush1.bf16.xpose.msra.mxu0 0
      %477 = vmatprep.subr.bf16.mxu0 0
      %478 = vmatpush1.bf16.xpose.msra.mxu0 0
      %479 = vmatprep.subr.bf16.mxu0 0
      %480 = vmatpush1.bf16.xpose.msra.mxu0 0
      %481 = vmatprep.subr.bf16.mxu0 0
      %482 = vmatpush1.bf16.xpose.msra.mxu0 0
      %483 = vmatprep.subr.bf16.mxu0 0
      %484 = vmatpush1.bf16.xpose.msra.mxu0 0
      %485 = vmatprep.subr.bf16.mxu0 0
      %486 = vmatpush1.bf16.xpose.msra.mxu0 0
      %487 = vmatprep.subr.bf16.mxu0 0
      %488 = vmatpush1.bf16.xpose.msra.mxu0 %v471
      %489 = vmatprep.subr.bf16.mxu0 0
      %490 = vmatpush2.bf16.xpose.msra.mxu0 0
      %491 = vmatprep.subr.bf16.mxu0 0
      %492 = vmatpush2.bf16.xpose.msra.mxu0 0
      %493 = vmatprep.subr.bf16.mxu0 0
      %494 = vmatpush2.bf16.xpose.msra.mxu0 0
      %495 = vmatprep.subr.bf16.mxu0 0
      %496 = vmatpush2.bf16.xpose.msra.mxu0 0
      %497 = vmatprep.subr.bf16.mxu0 0
      %498 = vmatpush2.bf16.xpose.msra.mxu0 0
      %499 = vmatprep.subr.bf16.mxu0 0
      %500 = vmatpush2.bf16.xpose.msra.mxu0 0
      %501 = vmatprep.subr.bf16.mxu0 0
      %502 = vmatpush2.bf16.xpose.msra.mxu0 0
      %503 = vmatprep.subr.bf16.mxu0 0
      %504 = vmatpush2.bf16.xpose.msra.mxu0 0
      %505 = vmatprep.mubr.bf16.mxu0 0
      %506 = vmatmul.mubr.bf16.gmra.mxu0 %v468
      %v507 = vpop.f32.mrf.mxu0
      %v508 = vadd.f32 0.0, %v507
      %v509 = vpop.f32.mrf.mxu0
      %v510 = vpop.f32.mrf.mxu0
      %v511 = vadd.f32 0.0, %v510
      %v512 = vpop.f32.mrf.mxu0
      %513 = vdwg.mxu0
      %v514 = vsel %vm343, %v508, -1e+30
      %v515 = vsel %vm343, %v511, -1e+30
      %v516 = vsel %vm346, %v514, -inf
      %517 = vmax.xlane.f32.xlu0 %v516
      %v518 = vpop.xlane.xlu0 %517
      %v519 = vsel %vm346, %v515, -inf
      %520 = vmax.xlane.f32.xlu0 %v519
      %v521 = vpop.xlane.xlu0 %520
      %v522 = vsub.f32 %v514, %v518
      %v523 = vsub.f32 %v515, %v521
      %v524 = vmul.f32 %v522, 1.442695
      %v525 = vpow.pop %v524
      %v526 = vmul.f32 %v523, 1.442695
      %v527 = vpow.pop %v526
      %v528 = vsel %vm346, %v525, 0.0
      %529 = vadd.xlane.f32.xlu0 %v528
      %v530 = vpop.xlane.xlu0 %529
      %v531 = vsel %vm346, %v527, 0.0
      %532 = vadd.xlane.f32.xlu0 %v531
      %v533 = vpop.xlane.xlu0 %532
      %v534 = vrcp.pop %v530
      %v535 = vrcp.pop %v533
      %v536 = vpack.c.bf16 %v527, %v525
      %537 = vrot.lane.b32.xlu0 %v284, 56
      %v538 = vpop.permute.xlu0 %537
      %540 = vxpose.xlu0.c.b16.start [1/8] %v538, 128
      %541 = vxpose.xlu0.c.b16.cont [2/8] 0, 128
      %542 = vxpose.xlu0.c.b16.cont [3/8] 0, 128
      %543 = vxpose.xlu0.c.b16.cont [4/8] 0, 128
      %544 = vxpose.xlu0.c.b16.cont [5/8] 0, 128
      %545 = vxpose.xlu0.c.b16.cont [6/8] 0, 128
      %546 = vxpose.xlu0.c.b16.cont [7/8] 0, 128
      %547 = vxpose.xlu0.c.b16.end [8/8] 0, 128
      %v548 = vpop.trf.xlu0
      %v549 = vpop.trf.xlu0
      %v550 = vpop.trf.xlu0
      %v551 = vpop.trf.xlu0
      %v552 = vpop.trf.xlu0
      %v553 = vpop.trf.xlu0
      %v554 = vpop.trf.xlu0
      %v555 = vpop.trf.xlu0
      %v557 = vsel %vm346, %v548, 0
      %v560 = vsel %vm346, %v536, 0
      %562 = vmatprep.subr.bf16.mxu0 0
      %563 = vmatpush1.bf16.xpose.msra.mxu0 0
      %564 = vmatprep.subr.bf16.mxu0 0
      %565 = vmatpush1.bf16.xpose.msra.mxu0 0
      %566 = vmatprep.subr.bf16.mxu0 0
      %567 = vmatpush1.bf16.xpose.msra.mxu0 0
      %568 = vmatprep.subr.bf16.mxu0 0
      %569 = vmatpush1.bf16.xpose.msra.mxu0 0
      %570 = vmatprep.subr.bf16.mxu0 0
      %571 = vmatpush1.bf16.xpose.msra.mxu0 0
      %572 = vmatprep.subr.bf16.mxu0 0
      %573 = vmatpush1.bf16.xpose.msra.mxu0 0
      %574 = vmatprep.subr.bf16.mxu0 0
      %575 = vmatpush1.bf16.xpose.msra.mxu0 0
      %576 = vmatprep.subr.bf16.mxu0 0
      %577 = vmatpush1.bf16.xpose.msra.mxu0 %v560
      %578 = vmatprep.subr.bf16.mxu0 0
      %579 = vmatpush2.bf16.xpose.msra.mxu0 0
      %580 = vmatprep.subr.bf16.mxu0 0
      %581 = vmatpush2.bf16.xpose.msra.mxu0 0
      %582 = vmatprep.subr.bf16.mxu0 0
      %583 = vmatpush2.bf16.xpose.msra.mxu0 0
      %584 = vmatprep.subr.bf16.mxu0 0
      %585 = vmatpush2.bf16.xpose.msra.mxu0 0
      %586 = vmatprep.subr.bf16.mxu0 0
      %587 = vmatpush2.bf16.xpose.msra.mxu0 0
      %588 = vmatprep.subr.bf16.mxu0 0
      %589 = vmatpush2.bf16.xpose.msra.mxu0 0
      %590 = vmatprep.subr.bf16.mxu0 0
      %591 = vmatpush2.bf16.xpose.msra.mxu0 0
      %592 = vmatprep.subr.bf16.mxu0 0
      %593 = vmatpush2.bf16.xpose.msra.mxu0 0
      %594 = vmatprep.mubr.bf16.mxu0 0
      %595 = vmatmul.mubr.bf16.gmra.mxu0 %v557
      %v596 = vpop.f32.mrf.mxu0
      %v597 = vadd.f32 0.0, %v596
      %v598 = vpop.f32.mrf.mxu0
      %v599 = vpop.f32.mrf.mxu0
      %v600 = vpop.f32.mrf.mxu0
      %601 = vdwg.mxu0
      %v604 = vlaneseq
      %v605 = vshrl.u32 %v604, 7
      %v606 = vsub.s32 %v436, %v605
      %v607 = vrot.slane %v534, %v606
      %v608 = vlaneseq
      %v609 = vshrl.u32 %v608, 7
      %v610 = vsub.s32 %v441, %v609
      %v611 = vrot.slane %v535, %v610
      %v612 = vsel %vm446, %v611, %v607
      %v613 = vsel %vm448, %v612, %v612
      %v614 = vsel %vm450, %v612, %v613
      %v615 = vsel %vm452, %v612, %v614
      %v616 = vsel %vm454, %v612, %v615
      %v617 = vsel %vm456, %v612, %v616
      %v618 = vsel %vm458, %v612, %v617
      %v620 = vmul.f32 %v597, %v618
      %621 = vst.msk [vmem:[%s184 + $0x8] sm:$0xff] %vm346, %v620
      %622 = vrot.lane.b32.xlu0 %v284, 112
      %v623 = vpop.permute.xlu0 %622
      %624 = vrot.lane.b32.xlu0 %v284, 80
      %v625 = vpop.permute.xlu0 %624
      %v627 = vsel %vm290, %v623, 0
      %v630 = vsel %vm290, %v625, 0
      %632 = vmatprep.subr.bf16.mxu0 0
      %633 = vmatpush1.bf16.xpose.msra.mxu0 0
      %634 = vmatprep.subr.bf16.mxu0 0
      %635 = vmatpush1.bf16.xpose.msra.mxu0 0
      %636 = vmatprep.subr.bf16.mxu0 0
      %637 = vmatpush1.bf16.xpose.msra.mxu0 0
      %638 = vmatprep.subr.bf16.mxu0 0
      %639 = vmatpush1.bf16.xpose.msra.mxu0 0
      %640 = vmatprep.subr.bf16.mxu0 0
      %641 = vmatpush1.bf16.xpose.msra.mxu0 0
      %642 = vmatprep.subr.bf16.mxu0 0
      %643 = vmatpush1.bf16.xpose.msra.mxu0 0
      %644 = vmatprep.subr.bf16.mxu0 0
      %645 = vmatpush1.bf16.xpose.msra.mxu0 0
      %646 = vmatprep.subr.bf16.mxu0 0
      %647 = vmatpush1.bf16.xpose.msra.mxu0 %v630
      %648 = vmatprep.subr.bf16.mxu0 0
      %649 = vmatpush2.bf16.xpose.msra.mxu0 0
      %650 = vmatprep.subr.bf16.mxu0 0
      %651 = vmatpush2.bf16.xpose.msra.mxu0 0
      %652 = vmatprep.subr.bf16.mxu0 0
      %653 = vmatpush2.bf16.xpose.msra.mxu0 0
      %654 = vmatprep.subr.bf16.mxu0 0
      %655 = vmatpush2.bf16.xpose.msra.mxu0 0
      %656 = vmatprep.subr.bf16.mxu0 0
      %657 = vmatpush2.bf16.xpose.msra.mxu0 0
      %658 = vmatprep.subr.bf16.mxu0 0
      %659 = vmatpush2.bf16.xpose.msra.mxu0 0
      %660 = vmatprep.subr.bf16.mxu0 0
      %661 = vmatpush2.bf16.xpose.msra.mxu0 0
      %662 = vmatprep.subr.bf16.mxu0 0
      %663 = vmatpush2.bf16.xpose.msra.mxu0 0
      %664 = vmatprep.mubr.bf16.mxu0 0
      %665 = vmatmul.mubr.bf16.gmra.mxu0 %v627
      %v666 = vpop.f32.mrf.mxu0
      %v667 = vadd.f32 0.0, %v666
      %v668 = vpop.f32.mrf.mxu0
      %v669 = vpop.f32.mrf.mxu0
      %v670 = vadd.f32 0.0, %v669
      %v671 = vpop.f32.mrf.mxu0
      %672 = vdwg.mxu0
      %v673 = vsel %vm343, %v667, -1e+30
      %v674 = vsel %vm343, %v670, -1e+30
      %v675 = vsel %vm346, %v673, -inf
      %676 = vmax.xlane.f32.xlu0 %v675
      %v677 = vpop.xlane.xlu0 %676
      %v678 = vsel %vm346, %v674, -inf
      %679 = vmax.xlane.f32.xlu0 %v678
      %v680 = vpop.xlane.xlu0 %679
      %v681 = vsub.f32 %v673, %v677
      %v682 = vsub.f32 %v674, %v680
      %v683 = vmul.f32 %v681, 1.442695
      %v684 = vpow.pop %v683
      %v685 = vmul.f32 %v682, 1.442695
      %v686 = vpow.pop %v685
      %v687 = vsel %vm346, %v684, 0.0
      %688 = vadd.xlane.f32.xlu0 %v687
      %v689 = vpop.xlane.xlu0 %688
      %v690 = vsel %vm346, %v686, 0.0
      %691 = vadd.xlane.f32.xlu0 %v690
      %v692 = vpop.xlane.xlu0 %691
      %v693 = vrcp.pop %v689
      %v694 = vrcp.pop %v692
      %v695 = vpack.c.bf16 %v686, %v684
      %696 = vrot.lane.b32.xlu0 %v284, 48
      %v697 = vpop.permute.xlu0 %696
      %699 = vxpose.xlu0.c.b16.start [1/8] %v697, 128
      %700 = vxpose.xlu0.c.b16.cont [2/8] 0, 128
      %701 = vxpose.xlu0.c.b16.cont [3/8] 0, 128
      %702 = vxpose.xlu0.c.b16.cont [4/8] 0, 128
      %703 = vxpose.xlu0.c.b16.cont [5/8] 0, 128
      %704 = vxpose.xlu0.c.b16.cont [6/8] 0, 128
      %705 = vxpose.xlu0.c.b16.cont [7/8] 0, 128
      %706 = vxpose.xlu0.c.b16.end [8/8] 0, 128
      %v707 = vpop.trf.xlu0
      %v708 = vpop.trf.xlu0
      %v709 = vpop.trf.xlu0
      %v710 = vpop.trf.xlu0
      %v711 = vpop.trf.xlu0
      %v712 = vpop.trf.xlu0
      %v713 = vpop.trf.xlu0
      %v714 = vpop.trf.xlu0
      %v716 = vsel %vm346, %v707, 0
      %v719 = vsel %vm346, %v695, 0
      %721 = vmatprep.subr.bf16.mxu0 0
      %722 = vmatpush1.bf16.xpose.msra.mxu0 0
      %723 = vmatprep.subr.bf16.mxu0 0
      %724 = vmatpush1.bf16.xpose.msra.mxu0 0
      %725 = vmatprep.subr.bf16.mxu0 0
      %726 = vmatpush1.bf16.xpose.msra.mxu0 0
      %727 = vmatprep.subr.bf16.mxu0 0
      %728 = vmatpush1.bf16.xpose.msra.mxu0 0
      %729 = vmatprep.subr.bf16.mxu0 0
      %730 = vmatpush1.bf16.xpose.msra.mxu0 0
      %731 = vmatprep.subr.bf16.mxu0 0
      %732 = vmatpush1.bf16.xpose.msra.mxu0 0
      %733 = vmatprep.subr.bf16.mxu0 0
      %734 = vmatpush1.bf16.xpose.msra.mxu0 0
      %735 = vmatprep.subr.bf16.mxu0 0
      %736 = vmatpush1.bf16.xpose.msra.mxu0 %v719
      %737 = vmatprep.subr.bf16.mxu0 0
      %738 = vmatpush2.bf16.xpose.msra.mxu0 0
      %739 = vmatprep.subr.bf16.mxu0 0
      %740 = vmatpush2.bf16.xpose.msra.mxu0 0
      %741 = vmatprep.subr.bf16.mxu0 0
      %742 = vmatpush2.bf16.xpose.msra.mxu0 0
      %743 = vmatprep.subr.bf16.mxu0 0
      %744 = vmatpush2.bf16.xpose.msra.mxu0 0
      %745 = vmatprep.subr.bf16.mxu0 0
      %746 = vmatpush2.bf16.xpose.msra.mxu0 0
      %747 = vmatprep.subr.bf16.mxu0 0
      %748 = vmatpush2.bf16.xpose.msra.mxu0 0
      %749 = vmatprep.subr.bf16.mxu0 0
      %750 = vmatpush2.bf16.xpose.msra.mxu0 0
      %751 = vmatprep.subr.bf16.mxu0 0
      %752 = vmatpush2.bf16.xpose.msra.mxu0 0
      %753 = vmatprep.mubr.bf16.mxu0 0
      %754 = vmatmul.mubr.bf16.gmra.mxu0 %v716
      %v755 = vpop.f32.mrf.mxu0
      %v756 = vadd.f32 0.0, %v755
      %v757 = vpop.f32.mrf.mxu0
      %v758 = vpop.f32.mrf.mxu0
      %v759 = vpop.f32.mrf.mxu0
      %760 = vdwg.mxu0
      %v763 = vlaneseq
      %v764 = vshrl.u32 %v763, 7
      %v765 = vsub.s32 %v436, %v764
      %v766 = vrot.slane %v693, %v765
      %v767 = vlaneseq
      %v768 = vshrl.u32 %v767, 7
      %v769 = vsub.s32 %v441, %v768
      %v770 = vrot.slane %v694, %v769
      %v771 = vsel %vm446, %v770, %v766
      %v772 = vsel %vm448, %v771, %v771
      %v773 = vsel %vm450, %v771, %v772
      %v774 = vsel %vm452, %v771, %v773
      %v775 = vsel %vm454, %v771, %v774
      %v776 = vsel %vm456, %v771, %v775
      %v777 = vsel %vm458, %v771, %v776
      %v779 = vmul.f32 %v756, %v777
      %780 = vst.msk [vmem:[%s184 + $0x10] sm:$0xff] %vm346, %v779
      %781 = vrot.lane.b32.xlu0 %v284, 104
      %v782 = vpop.permute.xlu0 %781
      %783 = vrot.lane.b32.xlu0 %v284, 72
      %v784 = vpop.permute.xlu0 %783
      %v786 = vsel %vm290, %v782, 0
      %v789 = vsel %vm290, %v784, 0
      %791 = vmatprep.subr.bf16.mxu0 0
      %792 = vmatpush1.bf16.xpose.msra.mxu0 0
      %793 = vmatprep.subr.bf16.mxu0 0
      %794 = vmatpush1.bf16.xpose.msra.mxu0 0
      %795 = vmatprep.subr.bf16.mxu0 0
      %796 = vmatpush1.bf16.xpose.msra.mxu0 0
      %797 = vmatprep.subr.bf16.mxu0 0
      %798 = vmatpush1.bf16.xpose.msra.mxu0 0
      %799 = vmatprep.subr.bf16.mxu0 0
      %800 = vmatpush1.bf16.xpose.msra.mxu0 0
      %801 = vmatprep.subr.bf16.mxu0 0
      %802 = vmatpush1.bf16.xpose.msra.mxu0 0
      %803 = vmatprep.subr.bf16.mxu0 0
      %804 = vmatpush1.bf16.xpose.msra.mxu0 0
      %805 = vmatprep.subr.bf16.mxu0 0
      %806 = vmatpush1.bf16.xpose.msra.mxu0 %v789
      %807 = vmatprep.subr.bf16.mxu0 0
      %808 = vmatpush2.bf16.xpose.msra.mxu0 0
      %809 = vmatprep.subr.bf16.mxu0 0
      %810 = vmatpush2.bf16.xpose.msra.mxu0 0
      %811 = vmatprep.subr.bf16.mxu0 0
      %812 = vmatpush2.bf16.xpose.msra.mxu0 0
      %813 = vmatprep.subr.bf16.mxu0 0
      %814 = vmatpush2.bf16.xpose.msra.mxu0 0
      %815 = vmatprep.subr.bf16.mxu0 0
      %816 = vmatpush2.bf16.xpose.msra.mxu0 0
      %817 = vmatprep.subr.bf16.mxu0 0
      %818 = vmatpush2.bf16.xpose.msra.mxu0 0
      %819 = vmatprep.subr.bf16.mxu0 0
      %820 = vmatpush2.bf16.xpose.msra.mxu0 0
      %821 = vmatprep.subr.bf16.mxu0 0
      %822 = vmatpush2.bf16.xpose.msra.mxu0 0
      %823 = vmatprep.mubr.bf16.mxu0 0
      %824 = vmatmul.mubr.bf16.gmra.mxu0 %v786
      %v825 = vpop.f32.mrf.mxu0
      %v826 = vadd.f32 0.0, %v825
      %v827 = vpop.f32.mrf.mxu0
      %v828 = vpop.f32.mrf.mxu0
      %v829 = vadd.f32 0.0, %v828
      %v830 = vpop.f32.mrf.mxu0
      %831 = vdwg.mxu0
      %v832 = vsel %vm343, %v826, -1e+30
      %v833 = vsel %vm343, %v829, -1e+30
      %v834 = vsel %vm346, %v832, -inf
      %835 = vmax.xlane.f32.xlu0 %v834
      %v836 = vpop.xlane.xlu0 %835
      %v837 = vsel %vm346, %v833, -inf
      %838 = vmax.xlane.f32.xlu0 %v837
      %v839 = vpop.xlane.xlu0 %838
      %v840 = vsub.f32 %v832, %v836
      %v841 = vsub.f32 %v833, %v839
      %v842 = vmul.f32 %v840, 1.442695
      %v843 = vpow.pop %v842
      %v844 = vmul.f32 %v841, 1.442695
      %v845 = vpow.pop %v844
      %v846 = vsel %vm346, %v843, 0.0
      %847 = vadd.xlane.f32.xlu0 %v846
      %v848 = vpop.xlane.xlu0 %847
      %v849 = vsel %vm346, %v845, 0.0
      %850 = vadd.xlane.f32.xlu0 %v849
      %v851 = vpop.xlane.xlu0 %850
      %v852 = vrcp.pop %v848
      %v853 = vrcp.pop %v851
      %v854 = vpack.c.bf16 %v845, %v843
      %855 = vrot.lane.b32.xlu0 %v284, 40
      %v856 = vpop.permute.xlu0 %855
      %858 = vxpose.xlu0.c.b16.start [1/8] %v856, 128
      %859 = vxpose.xlu0.c.b16.cont [2/8] 0, 128
      %860 = vxpose.xlu0.c.b16.cont [3/8] 0, 128
      %861 = vxpose.xlu0.c.b16.cont [4/8] 0, 128
      %862 = vxpose.xlu0.c.b16.cont [5/8] 0, 128
      %863 = vxpose.xlu0.c.b16.cont [6/8] 0, 128
      %864 = vxpose.xlu0.c.b16.cont [7/8] 0, 128
      %865 = vxpose.xlu0.c.b16.end [8/8] 0, 128
      %v866 = vpop.trf.xlu0
      %v867 = vpop.trf.xlu0
      %v868 = vpop.trf.xlu0
      %v869 = vpop.trf.xlu0
      %v870 = vpop.trf.xlu0
      %v871 = vpop.trf.xlu0
      %v872 = vpop.trf.xlu0
      %v873 = vpop.trf.xlu0
      %v875 = vsel %vm346, %v866, 0
      %v878 = vsel %vm346, %v854, 0
      %880 = vmatprep.subr.bf16.mxu0 0
      %881 = vmatpush1.bf16.xpose.msra.mxu0 0
      %882 = vmatprep.subr.bf16.mxu0 0
      %883 = vmatpush1.bf16.xpose.msra.mxu0 0
      %884 = vmatprep.subr.bf16.mxu0 0
      %885 = vmatpush1.bf16.xpose.msra.mxu0 0
      %886 = vmatprep.subr.bf16.mxu0 0
      %887 = vmatpush1.bf16.xpose.msra.mxu0 0
      %888 = vmatprep.subr.bf16.mxu0 0
      %889 = vmatpush1.bf16.xpose.msra.mxu0 0
      %890 = vmatprep.subr.bf16.mxu0 0
      %891 = vmatpush1.bf16.xpose.msra.mxu0 0
      %892 = vmatprep.subr.bf16.mxu0 0
      %893 = vmatpush1.bf16.xpose.msra.mxu0 0
      %894 = vmatprep.subr.bf16.mxu0 0
      %895 = vmatpush1.bf16.xpose.msra.mxu0 %v878
      %896 = vmatprep.subr.bf16.mxu0 0
      %897 = vmatpush2.bf16.xpose.msra.mxu0 0
      %898 = vmatprep.subr.bf16.mxu0 0
      %899 = vmatpush2.bf16.xpose.msra.mxu0 0
      %900 = vmatprep.subr.bf16.mxu0 0
      %901 = vmatpush2.bf16.xpose.msra.mxu0 0
      %902 = vmatprep.subr.bf16.mxu0 0
      %903 = vmatpush2.bf16.xpose.msra.mxu0 0
      %904 = vmatprep.subr.bf16.mxu0 0
      %905 = vmatpush2.bf16.xpose.msra.mxu0 0
      %906 = vmatprep.subr.bf16.mxu0 0
      %907 = vmatpush2.bf16.xpose.msra.mxu0 0
      %908 = vmatprep.subr.bf16.mxu0 0
      %909 = vmatpush2.bf16.xpose.msra.mxu0 0
      %910 = vmatprep.subr.bf16.mxu0 0
      %911 = vmatpush2.bf16.xpose.msra.mxu0 0
      %912 = vmatprep.mubr.bf16.mxu0 0
      %913 = vmatmul.mubr.bf16.gmra.mxu0 %v875
      %v914 = vpop.f32.mrf.mxu0
      %v915 = vadd.f32 0.0, %v914
      %v916 = vpop.f32.mrf.mxu0
      %v917 = vpop.f32.mrf.mxu0
      %v918 = vpop.f32.mrf.mxu0
      %919 = vdwg.mxu0
      %v922 = vlaneseq
      %v923 = vshrl.u32 %v922, 7
      %v924 = vsub.s32 %v436, %v923
      %v925 = vrot.slane %v852, %v924
      %v926 = vlaneseq
      %v927 = vshrl.u32 %v926, 7
      %v928 = vsub.s32 %v441, %v927
      %v929 = vrot.slane %v853, %v928
      %v930 = vsel %vm446, %v929, %v925
      %v931 = vsel %vm448, %v930, %v930
      %v932 = vsel %vm450, %v930, %v931
      %v933 = vsel %vm452, %v930, %v932
      %v934 = vsel %vm454, %v930, %v933
      %v935 = vsel %vm456, %v930, %v934
      %v936 = vsel %vm458, %v930, %v935
      %v938 = vmul.f32 %v915, %v936
      %939 = vst.msk [vmem:[%s184 + $0x18] sm:$0xff] %vm346, %v938
      %p940 = scmp.lt.s32.totalorder %s14, 1
      %s941 = scalar_select %p940, %s14, 1
      %s942 = smul.addr %s941, 4
      %s943 = smul.addr %s942, 8
      %s944 = scalar_lea.vmem %s3, %s943
      // Predicated region
      $region33: #{tpu_custom_call.1} parent=31 // pred_check
        %p945 = pneg %p105
      $region34: #{tpu_custom_call.1} parent=31 // pred_check_branch
        %947 = sbr.rel (%p945) target = $region36
      $region35: #{tpu_custom_call.1} parent=31 // pred_region
        _
      $region36: #{tpu_custom_call.1} parent=31 // pred_fallthru
        _
    $region32: #{tpu_custom_call.1} parent=5 // pred_fallthru
      _
    %p948 = scmp.le.s32.totalorder 2, %s9
    // Predicated region
    $region37: #{tpu_custom_call.1} parent=5 // pred_check
      %p949 = pneg %p948
    $region38: #{tpu_custom_call.1} parent=5 // pred_check_branch
      %951 = sbr.rel (%p949) target = $region40
    $region39: #{tpu_custom_call.1} parent=5 // pred_region
      %s952 = ssub.s32 %s9, 2
      // Predicated region
      $region41: #{tpu_custom_call.1} parent=39 // pred_check
        %p953 = pneg %p111
      $region42: #{tpu_custom_call.1} parent=39 // pred_check_branch
        %955 = sbr.rel (%p953) target = $region44
      $region43: #{tpu_custom_call.1} parent=39 // pred_region
        %p956 = scmp.lt.s32.totalorder %s15, 1
        %s957 = scalar_select %p956, %s15, 1
        %s958 = smul.addr %s957, 4
        %s959 = smul.addr %s958, 8
        %s960 = scalar_lea.vmem %s3, %s959
      $region44: #{tpu_custom_call.1} parent=39 // pred_fallthru
        _
    $region40: #{tpu_custom_call.1} parent=5 // pred_fallthru
      _
  $region6: #{tpu_custom_call.1} parent=0 // loop_footer
    %s13 = sadd.s32 1, %s9
  $region7: #{tpu_custom_call.1} parent=0 // loop_footer_branch
    %8 = sbr.rel target = $region3
  $region8: #{tpu_custom_call.1} parent=0 // loop_exit
    _

</llo_original>
